<compile_context>
chip_gen: v5e
topology: v5e:2x2
jax: 0.10.0
libtpu: 0.0.40
codegen_flags: <defaults>
</compile_context>

<pallas_src>
import math
from functools import partial

import jax
import jax.numpy as jnp
from jax.experimental import pallas as pl
from jax.experimental.pallas import tpu as pltpu

_VMEM_LIMIT = 32 * 1024 * 1024  # generous but safe on v5e/v6e/v7x


def _round_up(x, m):
    return ((x + m - 1) // m) * m


def _pad2(a, rows, cols):
    r, c = a.shape
    if r == rows and c == cols:
        return a
    return jnp.pad(a, ((0, rows - r), (0, cols - c)))


# ----------------------------------------------------------------------------
# Pallas kernel 1: tiled fused linear  y = relu_opt(((x @ w[.T]) + bias) * scale)
# grid = (M/tm, N/tn, K/tk), f32 accumulator in scratch, K axis is the reduction.
# ----------------------------------------------------------------------------
def _linear_kernel(relu, trans_b, x_ref, w_ref, b_ref, s_ref, o_ref, acc_ref):
    @pl.when(pl.program_id(2) == 0)
    def _():
        acc_ref[...] = jnp.zeros_like(acc_ref)

    if trans_b:
        acc_ref[...] += jax.lax.dot_general(
            x_ref[...], w_ref[...], (((1,), (1,)), ((), ())),
            preferred_element_type=jnp.float32)
    else:
        acc_ref[...] += jnp.dot(x_ref[...], w_ref[...],
                                preferred_element_type=jnp.float32)

    @pl.when(pl.program_id(2) == pl.num_programs(2) - 1)
    def _():
        y = (acc_ref[...] + b_ref[...]) * s_ref[...]
        if relu:
            y = jnp.maximum(y, 0.0)
        o_ref[...] = y


def pallas_linear(x, w, bias=None, scale=None, relu=False, trans_b=False,
                  tm_max=256, tn_max=256, tk_max=512):
    x = jnp.asarray(x, jnp.float32)
    w = jnp.asarray(w, jnp.float32)
    M, K = x.shape
    N = w.shape[0] if trans_b else w.shape[1]

    tm = tm_max if M > tm_max else M
    tn = tn_max if N > tn_max else N
    tk = tk_max if K > tk_max else K
    Mp, Np, Kp = _round_up(M, tm), _round_up(N, tn), _round_up(K, tk)

    xp = _pad2(x, Mp, Kp)
    wp = _pad2(w, Np, Kp) if trans_b else _pad2(w, Kp, Np)
    b = (jnp.zeros((1, Np), jnp.float32) if bias is None
         else _pad2(jnp.asarray(bias, jnp.float32).reshape(1, N), 1, Np))
    s = (jnp.ones((1, Np), jnp.float32) if scale is None
         else _pad2(jnp.asarray(scale, jnp.float32).reshape(1, N), 1, Np))

    if trans_b:
        w_spec = pl.BlockSpec((tn, tk), lambda i, j, k: (j, k))
    else:
        w_spec = pl.BlockSpec((tk, tn), lambda i, j, k: (k, j))

    out = pl.pallas_call(
        partial(_linear_kernel, relu, trans_b),
        out_shape=jax.ShapeDtypeStruct((Mp, Np), jnp.float32),
        grid=(Mp // tm, Np // tn, Kp // tk),
        in_specs=[pl.BlockSpec((tm, tk), lambda i, j, k: (i, k)),
                  w_spec,
                  pl.BlockSpec((1, tn), lambda i, j, k: (0, j)),
                  pl.BlockSpec((1, tn), lambda i, j, k: (0, j))],
        out_specs=pl.BlockSpec((tm, tn), lambda i, j, k: (i, j)),
        scratch_shapes=[pltpu.VMEM((tm, tn), jnp.float32)],
        compiler_params=pltpu.CompilerParams(
            dimension_semantics=("parallel", "parallel", "arbitrary"),
            vmem_limit_bytes=_VMEM_LIMIT),
    )(xp, wp, b, s)
    return out[:M, :N]


# ----------------------------------------------------------------------------
# Pallas kernel 2: TCN1d block — three depthwise convs (k=3,5,7, same padding)
# + eval-mode BatchNorm + ReLU, averaged, with residual:  out = x + (y1+y2+y3)/3
# Layout: time on sublanes, (batch * node) channels on lanes; grid over lane tiles.
# ----------------------------------------------------------------------------
def _tcn_kernel(xpad_ref, w3_ref, w5_ref, w7_ref, s_ref, o_ref):
    Wlen = o_ref.shape[0]
    xpad = xpad_ref[...]                       # (Wlen + 6, tl)
    x = xpad[3:3 + Wlen, :]
    acc = jnp.zeros_like(x)
    for bi, w_ref in enumerate((w3_ref, w5_ref, w7_ref)):
        k = w_ref.shape[0]
        start = 3 - (k - 1) // 2
        y = jnp.zeros_like(x)
        for u in range(k):                     # cross-correlation (Conv1d), bias = 0
            y = y + w_ref[u:u + 1, :] * xpad[start + u:start + u + Wlen, :]
        y = jnp.maximum(y * s_ref[bi:bi + 1, :], 0.0)   # folded eval-mode BN + ReLU
        acc = acc + y
    o_ref[...] = x + acc * (1.0 / 3.0)


def pallas_tcn(x_t, w3_t, w5_t, w7_t, s_t, tl_max=256):
    Wlen, L = x_t.shape
    tl = tl_max if L > tl_max else L
    Lp = _round_up(L, tl)
    xpad = jnp.pad(x_t.astype(jnp.float32), ((3, 3), (0, Lp - L)))
    out = pl.pallas_call(
        _tcn_kernel,
        out_shape=jax.ShapeDtypeStruct((Wlen, Lp), jnp.float32),
        grid=(Lp // tl,),
        in_specs=[pl.BlockSpec((Wlen + 6, tl), lambda l: (0, l)),
                  pl.BlockSpec((3, tl), lambda l: (0, l)),
                  pl.BlockSpec((5, tl), lambda l: (0, l)),
                  pl.BlockSpec((7, tl), lambda l: (0, l)),
                  pl.BlockSpec((3, tl), lambda l: (0, l))],
        out_specs=pl.BlockSpec((Wlen, tl), lambda l: (0, l)),
        compiler_params=pltpu.CompilerParams(
            dimension_semantics=("parallel",), vmem_limit_bytes=_VMEM_LIMIT),
    )(xpad, _pad2(w3_t, 3, Lp), _pad2(w5_t, 5, Lp), _pad2(w7_t, 7, Lp),
      _pad2(s_t, 3, Lp))
    return out[:, :L]


# ----------------------------------------------------------------------------
# Pallas kernel 3: per-edge row dot — edge_common[e] = sum_k a[k,e] * b[k,e]
# (replaces the dense adj @ adj.T).  Lane-dense (1, te) output, K accumulated.
# ----------------------------------------------------------------------------
def _rowdot_kernel(a_ref, b_ref, o_ref, acc_ref):
    @pl.when(pl.program_id(1) == 0)
    def _():
        acc_ref[...] = jnp.zeros_like(acc_ref)
    acc_ref[...] += jnp.sum(a_ref[...] * b_ref[...], axis=0, keepdims=True)

    @pl.when(pl.program_id(1) == pl.num_programs(1) - 1)
    def _():
        o_ref[...] = acc_ref[...]


def pallas_rowdot(a_t, b_t, te_max=512, tk_max=1024):
    K, E = a_t.shape
    te = te_max if E > te_max else _round_up(E, 128)
    Ep = _round_up(E, te)
    tk = tk_max if K > tk_max else K
    Kp = _round_up(K, tk)
    out = pl.pallas_call(
        _rowdot_kernel,
        out_shape=jax.ShapeDtypeStruct((1, Ep), jnp.float32),
        grid=(Ep // te, Kp // tk),
        in_specs=[pl.BlockSpec((tk, te), lambda e, k: (k, e)),
                  pl.BlockSpec((tk, te), lambda e, k: (k, e))],
        out_specs=pl.BlockSpec((1, te), lambda e, k: (0, e)),
        scratch_shapes=[pltpu.VMEM((1, te), jnp.float32)],
        compiler_params=pltpu.CompilerParams(
            dimension_semantics=("parallel", "arbitrary"),
            vmem_limit_bytes=_VMEM_LIMIT),
    )(_pad2(a_t.astype(jnp.float32), Kp, Ep),
      _pad2(b_t.astype(jnp.float32), Kp, Ep))
    return out[0, :E]


# ----------------------------------------------------------------------------
# Pallas kernel 4: per-edge GAT attention logits.  Inputs are (C, E) so the
# alpha output is lane-dense (1, E); the dots run on the MXU against a stacked
# (8, C) attention matrix (rows: att_i, att_j, att_em_i+att_em_j, att_struct).
# ----------------------------------------------------------------------------
def _edge_alpha_kernel(neg_slope, xs_ref, xd_ref, emb_ref, sm_ref, ew_ref,
                       att_ref, o_ref):
    att = att_ref[...]                                           # (8, C)
    dd = jnp.dot(att, xd_ref[...], preferred_element_type=jnp.float32)  # (8, te)
    ds = jnp.dot(att, xs_ref[...], preferred_element_type=jnp.float32)
    de = jnp.dot(att, emb_ref[...], preferred_element_type=jnp.float32)
    sm = sm_ref[...]
    ew = ew_ref[...]
    a = dd[0:1, :] + sm * ds[1:2, :] + de[2:3, :] + sm * ew * ds[3:4, :]
    o_ref[...] = jnp.where(a >= 0.0, a, neg_slope * a)           # leaky ReLU


def pallas_edge_alpha(xs_t, xd_t, emb_t, sm, ew, att_t, neg_slope, te_max=512):
    C, E = xs_t.shape
    te = te_max if E > te_max else _round_up(E, 128)
    Ep = _round_up(E, te)
    _p = lambda a: _pad2(a.astype(jnp.float32), a.shape[0], Ep)
    out = pl.pallas_call(
        partial(_edge_alpha_kernel, neg_slope),
        out_shape=jax.ShapeDtypeStruct((1, Ep), jnp.float32),
        grid=(Ep // te,),
        in_specs=[pl.BlockSpec((C, te), lambda e: (0, e)),
                  pl.BlockSpec((C, te), lambda e: (0, e)),
                  pl.BlockSpec((C, te), lambda e: (0, e)),
                  pl.BlockSpec((1, te), lambda e: (0, e)),
                  pl.BlockSpec((1, te), lambda e: (0, e)),
                  pl.BlockSpec((8, C), lambda e: (0, 0))],
        out_specs=pl.BlockSpec((1, te), lambda e: (0, e)),
        compiler_params=pltpu.CompilerParams(
            dimension_semantics=("parallel",), vmem_limit_bytes=_VMEM_LIMIT),
    )(_p(xs_t), _p(xd_t), _p(emb_t),
      _pad2(sm.reshape(1, E).astype(jnp.float32), 1, Ep),
      _pad2(ew.reshape(1, E).astype(jnp.float32), 1, Ep),
      att_t.astype(jnp.float32))
    return out[0, :E]


# ----------------------------------------------------------------------------
# Pallas kernel 5: weighted segment scatter-add
#   out[f, t] = sum_{e : idx[e] == t} w[e] * feat[f, e]
# Edges stream over the lanes of a one-hot block that is contracted on the MXU;
# the node axis is tiled (parallel) so the accumulator stays small.
# Replaces both the dense wmat @ x_flat and the T x E scatter-matrix @ messages.
# ----------------------------------------------------------------------------
def _scatter_add_kernel(feat_ref, idx_ref, w_ref, o_ref, acc_ref):
    @pl.when(pl.program_id(1) == 0)
    def _():
        acc_ref[...] = jnp.zeros_like(acc_ref)

    t_tile = acc_ref.shape[1]
    te = idx_ref.shape[1]
    row_ids = (jax.lax.broadcasted_iota(jnp.int32, (t_tile, te), 0)
               + pl.program_id(0) * t_tile)
    onehot = (row_ids == idx_ref[...]).astype(jnp.float32) * w_ref[...]  # (tT, te)
    acc_ref[...] += jax.lax.dot_general(
        feat_ref[...], onehot, (((1,), (1,)), ((), ())),
        preferred_element_type=jnp.float32)                              # (F, tT)

    @pl.when(pl.program_id(1) == pl.num_programs(1) - 1)
    def _():
        o_ref[...] = acc_ref[...]


def pallas_scatter_add(feat_t, idx, w, num_segments, te_max=512, tt_max=1024):
    F, E = feat_t.shape
    te = te_max if E > te_max else _round_up(E, 128)
    Ep = _round_up(E, te)
    tt = tt_max if num_segments > tt_max else num_segments
    Tp = _round_up(num_segments, tt)
    out = pl.pallas_call(
        _scatter_add_kernel,
        out_shape=jax.ShapeDtypeStruct((F, Tp), jnp.float32),
        grid=(Tp // tt, Ep // te),
        in_specs=[pl.BlockSpec((F, te), lambda t, e: (0, e)),
                  pl.BlockSpec((1, te), lambda t, e: (0, e)),
                  pl.BlockSpec((1, te), lambda t, e: (0, e))],
        out_specs=pl.BlockSpec((F, tt), lambda t, e: (0, t)),
        scratch_shapes=[pltpu.VMEM((F, tt), jnp.float32)],
        compiler_params=pltpu.CompilerParams(
            dimension_semantics=("parallel", "arbitrary"),
            vmem_limit_bytes=_VMEM_LIMIT),
    )(_pad2(feat_t.astype(jnp.float32), F, Ep),
      _pad2(idx.reshape(1, E).astype(jnp.int32), 1, Ep),
      _pad2(w.reshape(1, E).astype(jnp.float32), 1, Ep))
    return out[:, :num_segments]


# ----------------------------------------------------------------------------
# Full forward pass
# ----------------------------------------------------------------------------
def dynamic_graph_embedding_forward(params, x, topk, lambda_val=1.0, neg_slope=0.2):
    B, Wlen, N = x.shape
    C = params['embedding'].shape[1]
    T = B * N

    # 1) multi-scale depthwise TCN with residual (time on sublanes, B*N on lanes)
    x_t = jnp.transpose(x.astype(jnp.float32), (1, 0, 2)).reshape(Wlen, T)
    x_flat_T = pallas_tcn(x_t,
                          jnp.tile(params['w3'].T, (1, B)),
                          jnp.tile(params['w5'].T, (1, B)),
                          jnp.tile(params['w7'].T, (1, B)),
                          jnp.tile(params['tcn_bn_scale'].T, (1, B)))   # (W, T)
    x_flat = x_flat_T.T                                                 # (T, W)

    emb = params['embedding']                                           # (N, C)

    # 2) top-k graph from embedding cosine similarity (MXU, emb.T never built)
    gram = pallas_linear(emb, emb, trans_b=True)                        # (N, N)
    norms = jnp.sqrt(jnp.sum(emb * emb, axis=-1))
    cos = gram / (norms[:, None] * norms[None, :] + 1e-8)
    topk_idx = jax.lax.top_k(cos, topk)[1]                              # (N, topk)
    gated_i = jnp.repeat(jnp.arange(N, dtype=jnp.int32), topk)
    gated_j = topk_idx.reshape(-1).astype(jnp.int32)
    e_src = jnp.concatenate([gated_j, gated_i])                         # source row
    e_dst = jnp.concatenate([gated_i, gated_j])                         # target row
    offs = (jnp.arange(B, dtype=jnp.int32) * N)[:, None]
    src0 = (e_src[None, :] + offs).reshape(-1)                          # (E0,)
    dst0 = (e_dst[None, :] + offs).reshape(-1)
    E0 = src0.shape[0]

    # 3) structural coefficients (GraphSNN) without the dense T x T matmul.
    #    adj_t == adj.T built directly; duplicates sum (matches sparse_coo.to_dense).
    adj_t = jnp.zeros((T, T), jnp.float32).at[dst0, src0].add(1.0)
    rows_s_t = jnp.take(adj_t, src0, axis=1)                            # (T, E0)
    rows_d_t = jnp.take(adj_t, dst0, axis=1)
    edge_common = pallas_rowdot(rows_s_t, rows_d_t)                     # (E0,)
    coeffs = (2.0 + edge_common) ** lambda_val
    row_sum = jax.ops.segment_sum(coeffs, src0, num_segments=T)
    norm_coeffs = coeffs / (row_sum[src0] + 1e-8)

    # 4) subgraph feature enhancement: weighted neighbor scatter-add + 2-layer MLP
    neigh_T = jnp.take(x_flat_T, dst0, axis=1)                          # (W, E0)
    aggregated = pallas_scatter_add(neigh_T, src0, norm_coeffs, T).T    # (T, W)
    h = pallas_linear(x_flat + aggregated, params['sg_w1'], params['sg_b1'],
                      relu=True)
    subgraph_feat = pallas_linear(h, params['sg_w2'], params['sg_b2'])
    x_enh = x_flat + 0.1 * subgraph_feat

    # 5) GraphLayer: lin projection, masked self-loop removal + fresh self-loops
    xl = pallas_linear(x_enh, params['w_lin'])                          # (T, C)
    xl_T = xl.T                                                         # (C, T)
    all_emb_T = jnp.tile(emb.T, (1, B))                                 # (C, T)

    arangeT = jnp.arange(T, dtype=jnp.int32)
    src = jnp.concatenate([src0, arangeT])
    dst = jnp.concatenate([dst0, arangeT])
    ew = jnp.concatenate([norm_coeffs, jnp.ones((T,), jnp.float32)])
    valid = jnp.concatenate([src0 != dst0, jnp.ones((T,), dtype=bool)])

    gate = params['struct_gate']
    sm = (1.0 - gate) + gate * ew                                       # per-edge gate

    xs_T = jnp.take(xl_T, src, axis=1)                                  # (C, E)
    xd_T = jnp.take(xl_T, dst, axis=1)
    emb_T = jnp.take(all_emb_T, dst, axis=1)

    att_T = jnp.concatenate([
        params['att_i'], params['att_j'],
        params['att_em_i'] + params['att_em_j'],                        # folded
        params['att_struct'],
        jnp.zeros((4, C), jnp.float32)], axis=0)                        # (8, C)

    alpha = pallas_edge_alpha(xs_T, xd_T, emb_T, sm, ew, att_T, neg_slope)

    # segment softmax over target nodes (torch_geometric.utils.softmax semantics)
    alpha_m = jnp.where(valid, alpha, jnp.float32(-1e30))
    gmax = jax.ops.segment_max(alpha_m, dst, num_segments=T)
    ex = jnp.where(valid, jnp.exp(alpha - gmax[dst]), 0.0)
    denom = jax.ops.segment_sum(ex, dst, num_segments=T) + 1e-16
    alpha_soft = ex / denom[dst]

    # aggregate weighted messages per target node:  sum_e alpha * (sm * x_j)
    out_agg_T = pallas_scatter_add(xs_T, dst, alpha_soft * sm, T)       # (C, T)

    # struct_transform + GraphLayer bias + eval-mode BatchNorm + ReLU (fused)
    out = pallas_linear(out_agg_T.T, params['w_st'],
                        bias=params['b_st'] + params['gl_bias'],
                        scale=params['gl_bn_scale'], relu=True)         # (T, C)
    out = out.reshape(B, N, C).transpose(0, 2, 1)                       # (B, C, N)

    # TODO(synk): PyTorch returns attention over the compacted (self-loop-removed)
    # edge list whose length is data dependent; here we return the masked version.
    return out, (jnp.stack([src, dst]), alpha_soft, valid)


# ----------------------------------------------------------------------------
# Deterministic parameter initialization (shapes per module __init__)
# ----------------------------------------------------------------------------
def init_params(key, in_channels, out_channels, num_nodes):
    Wlen, C, N = in_channels, out_channels, num_nodes
    ks = jax.random.split(key, 16)
    inv = 1.0 / math.sqrt(1.0 + 1e-5)        # eval-mode BN, running stats (0, 1)
    gammas = 1.0 + 0.02 * jax.random.normal(ks[0], (N, 3))
    params = dict(
        # TCN1d depthwise convs (biases = 0 per weights_init)
        w3=jax.random.normal(ks[1], (N, 3)) * 0.5,
        w5=jax.random.normal(ks[2], (N, 5)) * 0.4,
        w7=jax.random.normal(ks[3], (N, 7)) * 0.3,
        tcn_bn_scale=gammas * inv,
        # nn.Embedding(num_nodes, out_channels)
        embedding=jax.random.uniform(ks[4], (N, C), minval=-0.5, maxval=0.5),
        # subgraph_mlp: Linear(W,W) -> ReLU -> Linear(W,W); stored as (in, out)
        sg_w1=jax.random.normal(ks[5], (Wlen, Wlen)) / math.sqrt(Wlen),
        sg_b1=jax.random.normal(ks[6], (Wlen,)) * 0.01,
        sg_w2=jax.random.normal(ks[7], (Wlen, Wlen)) / math.sqrt(Wlen),
        sg_b2=jax.random.normal(ks[8], (Wlen,)) * 0.01,
        # GraphLayer (heads=1, concat=False)
        w_lin=jax.random.normal(ks[9], (Wlen, C)) * math.sqrt(2.0 / (Wlen + C)),
        att_i=jax.random.normal(ks[10], (1, C)) * math.sqrt(2.0 / C),
        att_j=jax.random.normal(ks[11], (1, C)) * math.sqrt(2.0 / C),
        att_struct=jax.random.normal(ks[12], (1, C)) * math.sqrt(2.0 / C),
        att_em_i=jnp.zeros((1, C)),           # zeros() in reset_parameters
        att_em_j=jnp.zeros((1, C)),
        struct_gate=jnp.float32(0.5),
        gl_bias=jnp.zeros((C,)),              # zeros() in reset_parameters
        w_st=jax.random.normal(ks[13], (C, C)) * math.sqrt(1.0 / C),
        b_st=jax.random.normal(ks[14], (C,)) * 0.01,
        gl_bn_scale=jnp.full((C,), inv),
    )
    return jax.tree.map(lambda a: jnp.asarray(a, jnp.float32), params)


if __name__ == "__main__":
    key = jax.random.PRNGKey(0)
    batch, window, num_nodes, out_channels, topk = 2, 16, 8, 32, 4
    k_par, k_x = jax.random.split(key)
    params = init_params(k_par, in_channels=window, out_channels=out_channels,
                         num_nodes=num_nodes)
    x = jax.random.normal(k_x, (batch, window, num_nodes), jnp.float32)

    out, (edge_index, attn, valid) = dynamic_graph_embedding_forward(
        params, x, topk=topk, lambda_val=1.0, neg_slope=0.2)
    out = jax.block_until_ready(out)
    assert out.shape == (batch, out_channels, num_nodes)
    assert bool(jnp.all(jnp.isfinite(out)))
    print("KERNEL_OK")
</pallas_src>

<mosaic_0001>
module attributes {stable_mosaic.version = 11 : i64} {
  func.func @_tcn_kernel(%arg0: i32, %arg1: memref<22x16xf32, #tpu.memory_space<vmem>>, %arg2: memref<3x16xf32, #tpu.memory_space<vmem>>, %arg3: memref<5x16xf32, #tpu.memory_space<vmem>>, %arg4: memref<7x16xf32, #tpu.memory_space<vmem>>, %arg5: memref<3x16xf32, #tpu.memory_space<vmem>>, %arg6: memref<16x16xf32, #tpu.memory_space<vmem>>) attributes {dimension_semantics = [#tpu.dimension_semantics<parallel>], iteration_bounds = array<i64: 1>, scalar_prefetch = 0 : i64, scratch_operands = 0 : i64, tpu.core_type = #tpu.core_type<tc>, window_params = [{transform_indices = @transform_0, window_bounds = array<i64: 22, 16>}, {transform_indices = @transform_1, window_bounds = array<i64: 3, 16>}, {transform_indices = @transform_2, window_bounds = array<i64: 5, 16>}, {transform_indices = @transform_3, window_bounds = array<i64: 7, 16>}, {transform_indices = @transform_4, window_bounds = array<i64: 3, 16>}, {transform_indices = @transform_5, window_bounds = array<i64: 16, 16>}]} {
    %c0 = arith.constant 0 : index
    %c0_0 = arith.constant 0 : index
    %0 = vector.load %arg1[%c0, %c0_0] : memref<22x16xf32, #tpu.memory_space<vmem>>, vector<22x16xf32>
    %1 = vector.extract_strided_slice %0 {offsets = [3, 0], sizes = [16, 16], strides = [1, 1]} : vector<22x16xf32> to vector<16x16xf32>
    %cst = arith.constant 0.000000e+00 : f32
    %2 = vector.broadcast %cst : f32 to vector<16x16xf32>
    %cst_1 = arith.constant 0.000000e+00 : f32
    %3 = vector.broadcast %cst_1 : f32 to vector<16x16xf32>
    %c0_2 = arith.constant 0 : index
    %c0_3 = arith.constant 0 : index
    %4 = vector.load %arg2[%c0_2, %c0_3] : memref<3x16xf32, #tpu.memory_space<vmem>>, vector<1x16xf32>
    %5 = vector.extract_strided_slice %0 {offsets = [2, 0], sizes = [16, 16], strides = [1, 1]} : vector<22x16xf32> to vector<16x16xf32>
    %6 = vector.broadcast %4 : vector<1x16xf32> to vector<16x16xf32>
    %7 = arith.mulf %6, %5 : vector<16x16xf32>
    %8 = arith.addf %3, %7 : vector<16x16xf32>
    %c1 = arith.constant 1 : index
    %c0_4 = arith.constant 0 : index
    %9 = vector.load %arg2[%c1, %c0_4] : memref<3x16xf32, #tpu.memory_space<vmem>>, vector<1x16xf32>
    %10 = vector.extract_strided_slice %0 {offsets = [3, 0], sizes = [16, 16], strides = [1, 1]} : vector<22x16xf32> to vector<16x16xf32>
    %11 = vector.broadcast %9 : vector<1x16xf32> to vector<16x16xf32>
    %12 = arith.mulf %11, %10 : vector<16x16xf32>
    %13 = arith.addf %8, %12 : vector<16x16xf32>
    %c2 = arith.constant 2 : index
    %c0_5 = arith.constant 0 : index
    %14 = vector.load %arg2[%c2, %c0_5] : memref<3x16xf32, #tpu.memory_space<vmem>>, vector<1x16xf32>
    %15 = vector.extract_strided_slice %0 {offsets = [4, 0], sizes = [16, 16], strides = [1, 1]} : vector<22x16xf32> to vector<16x16xf32>
    %16 = vector.broadcast %14 : vector<1x16xf32> to vector<16x16xf32>
    %17 = arith.mulf %16, %15 : vector<16x16xf32>
    %18 = arith.addf %13, %17 : vector<16x16xf32>
    %c0_6 = arith.constant 0 : index
    %c0_7 = arith.constant 0 : index
    %19 = vector.load %arg5[%c0_6, %c0_7] : memref<3x16xf32, #tpu.memory_space<vmem>>, vector<1x16xf32>
    %20 = vector.broadcast %19 : vector<1x16xf32> to vector<16x16xf32>
    %21 = arith.mulf %18, %20 : vector<16x16xf32>
    %cst_8 = arith.constant 0.000000e+00 : f32
    %22 = vector.broadcast %cst_8 : f32 to vector<16x16xf32>
    %23 = arith.maximumf %21, %22 : vector<16x16xf32>
    %24 = arith.addf %2, %23 : vector<16x16xf32>
    %cst_9 = arith.constant 0.000000e+00 : f32
    %25 = vector.broadcast %cst_9 : f32 to vector<16x16xf32>
    %c0_10 = arith.constant 0 : index
    %c0_11 = arith.constant 0 : index
    %26 = vector.load %arg3[%c0_10, %c0_11] : memref<5x16xf32, #tpu.memory_space<vmem>>, vector<1x16xf32>
    %27 = vector.extract_strided_slice %0 {offsets = [1, 0], sizes = [16, 16], strides = [1, 1]} : vector<22x16xf32> to vector<16x16xf32>
    %28 = vector.broadcast %26 : vector<1x16xf32> to vector<16x16xf32>
    %29 = arith.mulf %28, %27 : vector<16x16xf32>
    %30 = arith.addf %25, %29 : vector<16x16xf32>
    %c1_12 = arith.constant 1 : index
    %c0_13 = arith.constant 0 : index
    %31 = vector.load %arg3[%c1_12, %c0_13] : memref<5x16xf32, #tpu.memory_space<vmem>>, vector<1x16xf32>
    %32 = vector.extract_strided_slice %0 {offsets = [2, 0], sizes = [16, 16], strides = [1, 1]} : vector<22x16xf32> to vector<16x16xf32>
    %33 = vector.broadcast %31 : vector<1x16xf32> to vector<16x16xf32>
    %34 = arith.mulf %33, %32 : vector<16x16xf32>
    %35 = arith.addf %30, %34 : vector<16x16xf32>
    %c2_14 = arith.constant 2 : index
    %c0_15 = arith.constant 0 : index
    %36 = vector.load %arg3[%c2_14, %c0_15] : memref<5x16xf32, #tpu.memory_space<vmem>>, vector<1x16xf32>
    %37 = vector.extract_strided_slice %0 {offsets = [3, 0], sizes = [16, 16], strides = [1, 1]} : vector<22x16xf32> to vector<16x16xf32>
    %38 = vector.broadcast %36 : vector<1x16xf32> to vector<16x16xf32>
    %39 = arith.mulf %38, %37 : vector<16x16xf32>
    %40 = arith.addf %35, %39 : vector<16x16xf32>
    %c3 = arith.constant 3 : index
    %c0_16 = arith.constant 0 : index
    %41 = vector.load %arg3[%c3, %c0_16] : memref<5x16xf32, #tpu.memory_space<vmem>>, vector<1x16xf32>
    %42 = vector.extract_strided_slice %0 {offsets = [4, 0], sizes = [16, 16], strides = [1, 1]} : vector<22x16xf32> to vector<16x16xf32>
    %43 = vector.broadcast %41 : vector<1x16xf32> to vector<16x16xf32>
    %44 = arith.mulf %43, %42 : vector<16x16xf32>
    %45 = arith.addf %40, %44 : vector<16x16xf32>
    %c4 = arith.constant 4 : index
    %c0_17 = arith.constant 0 : index
    %46 = vector.load %arg3[%c4, %c0_17] : memref<5x16xf32, #tpu.memory_space<vmem>>, vector<1x16xf32>
    %47 = vector.extract_strided_slice %0 {offsets = [5, 0], sizes = [16, 16], strides = [1, 1]} : vector<22x16xf32> to vector<16x16xf32>
    %48 = vector.broadcast %46 : vector<1x16xf32> to vector<16x16xf32>
    %49 = arith.mulf %48, %47 : vector<16x16xf32>
    %50 = arith.addf %45, %49 : vector<16x16xf32>
    %c1_18 = arith.constant 1 : index
    %c0_19 = arith.constant 0 : index
    %51 = vector.load %arg5[%c1_18, %c0_19] : memref<3x16xf32, #tpu.memory_space<vmem>>, vector<1x16xf32>
    %52 = vector.broadcast %51 : vector<1x16xf32> to vector<16x16xf32>
    %53 = arith.mulf %50, %52 : vector<16x16xf32>
    %cst_20 = arith.constant 0.000000e+00 : f32
    %54 = vector.broadcast %cst_20 : f32 to vector<16x16xf32>
    %55 = arith.maximumf %53, %54 : vector<16x16xf32>
    %56 = arith.addf %24, %55 : vector<16x16xf32>
    %cst_21 = arith.constant 0.000000e+00 : f32
    %57 = vector.broadcast %cst_21 : f32 to vector<16x16xf32>
    %c0_22 = arith.constant 0 : index
    %c0_23 = arith.constant 0 : index
    %58 = vector.load %arg4[%c0_22, %c0_23] : memref<7x16xf32, #tpu.memory_space<vmem>>, vector<1x16xf32>
    %59 = vector.extract_strided_slice %0 {offsets = [0, 0], sizes = [16, 16], strides = [1, 1]} : vector<22x16xf32> to vector<16x16xf32>
    %60 = vector.broadcast %58 : vector<1x16xf32> to vector<16x16xf32>
    %61 = arith.mulf %60, %59 : vector<16x16xf32>
    %62 = arith.addf %57, %61 : vector<16x16xf32>
    %c1_24 = arith.constant 1 : index
    %c0_25 = arith.constant 0 : index
    %63 = vector.load %arg4[%c1_24, %c0_25] : memref<7x16xf32, #tpu.memory_space<vmem>>, vector<1x16xf32>
    %64 = vector.extract_strided_slice %0 {offsets = [1, 0], sizes = [16, 16], strides = [1, 1]} : vector<22x16xf32> to vector<16x16xf32>
    %65 = vector.broadcast %63 : vector<1x16xf32> to vector<16x16xf32>
    %66 = arith.mulf %65, %64 : vector<16x16xf32>
    %67 = arith.addf %62, %66 : vector<16x16xf32>
    %c2_26 = arith.constant 2 : index
    %c0_27 = arith.constant 0 : index
    %68 = vector.load %arg4[%c2_26, %c0_27] : memref<7x16xf32, #tpu.memory_space<vmem>>, vector<1x16xf32>
    %69 = vector.extract_strided_slice %0 {offsets = [2, 0], sizes = [16, 16], strides = [1, 1]} : vector<22x16xf32> to vector<16x16xf32>
    %70 = vector.broadcast %68 : vector<1x16xf32> to vector<16x16xf32>
    %71 = arith.mulf %70, %69 : vector<16x16xf32>
    %72 = arith.addf %67, %71 : vector<16x16xf32>
    %c3_28 = arith.constant 3 : index
    %c0_29 = arith.constant 0 : index
    %73 = vector.load %arg4[%c3_28, %c0_29] : memref<7x16xf32, #tpu.memory_space<vmem>>, vector<1x16xf32>
    %74 = vector.extract_strided_slice %0 {offsets = [3, 0], sizes = [16, 16], strides = [1, 1]} : vector<22x16xf32> to vector<16x16xf32>
    %75 = vector.broadcast %73 : vector<1x16xf32> to vector<16x16xf32>
    %76 = arith.mulf %75, %74 : vector<16x16xf32>
    %77 = arith.addf %72, %76 : vector<16x16xf32>
    %c4_30 = arith.constant 4 : index
    %c0_31 = arith.constant 0 : index
    %78 = vector.load %arg4[%c4_30, %c0_31] : memref<7x16xf32, #tpu.memory_space<vmem>>, vector<1x16xf32>
    %79 = vector.extract_strided_slice %0 {offsets = [4, 0], sizes = [16, 16], strides = [1, 1]} : vector<22x16xf32> to vector<16x16xf32>
    %80 = vector.broadcast %78 : vector<1x16xf32> to vector<16x16xf32>
    %81 = arith.mulf %80, %79 : vector<16x16xf32>
    %82 = arith.addf %77, %81 : vector<16x16xf32>
    %c5 = arith.constant 5 : index
    %c0_32 = arith.constant 0 : index
    %83 = vector.load %arg4[%c5, %c0_32] : memref<7x16xf32, #tpu.memory_space<vmem>>, vector<1x16xf32>
    %84 = vector.extract_strided_slice %0 {offsets = [5, 0], sizes = [16, 16], strides = [1, 1]} : vector<22x16xf32> to vector<16x16xf32>
    %85 = vector.broadcast %83 : vector<1x16xf32> to vector<16x16xf32>
    %86 = arith.mulf %85, %84 : vector<16x16xf32>
    %87 = arith.addf %82, %86 : vector<16x16xf32>
    %c6 = arith.constant 6 : index
    %c0_33 = arith.constant 0 : index
    %88 = vector.load %arg4[%c6, %c0_33] : memref<7x16xf32, #tpu.memory_space<vmem>>, vector<1x16xf32>
    %89 = vector.extract_strided_slice %0 {offsets = [6, 0], sizes = [16, 16], strides = [1, 1]} : vector<22x16xf32> to vector<16x16xf32>
    %90 = vector.broadcast %88 : vector<1x16xf32> to vector<16x16xf32>
    %91 = arith.mulf %90, %89 : vector<16x16xf32>
    %92 = arith.addf %87, %91 : vector<16x16xf32>
    %c2_34 = arith.constant 2 : index
    %c0_35 = arith.constant 0 : index
    %93 = vector.load %arg5[%c2_34, %c0_35] : memref<3x16xf32, #tpu.memory_space<vmem>>, vector<1x16xf32>
    %94 = vector.broadcast %93 : vector<1x16xf32> to vector<16x16xf32>
    %95 = arith.mulf %92, %94 : vector<16x16xf32>
    %cst_36 = arith.constant 0.000000e+00 : f32
    %96 = vector.broadcast %cst_36 : f32 to vector<16x16xf32>
    %97 = arith.maximumf %95, %96 : vector<16x16xf32>
    %98 = arith.addf %56, %97 : vector<16x16xf32>
    %cst_37 = arith.constant 0.333333343 : f32
    %99 = vector.broadcast %cst_37 : f32 to vector<16x16xf32>
    %100 = arith.mulf %98, %99 : vector<16x16xf32>
    %101 = arith.addf %1, %100 : vector<16x16xf32>
    %c0_38 = arith.constant 0 : index
    %c0_39 = arith.constant 0 : index
    %102 = vector.load %arg6[%c0_38, %c0_39] : memref<16x16xf32, #tpu.memory_space<vmem>>, vector<16x16xf32>
    tpu.vector_store %arg6[%c0_38, %c0_39], %101 {strides = array<i32>} : memref<16x16xf32, #tpu.memory_space<vmem>>, vector<16x16xf32>,
    return
  }
  func.func @transform_0(%arg0: i32) -> (i32, i32) {
    %c0_i32 = arith.constant 0 : i32
    %c0_i32_0 = arith.constant 0 : i32
    return %c0_i32, %arg0 : i32, i32
  }
  func.func @transform_1(%arg0: i32) -> (i32, i32) {
    %c0_i32 = arith.constant 0 : i32
    %c0_i32_0 = arith.constant 0 : i32
    return %c0_i32, %arg0 : i32, i32
  }
  func.func @transform_2(%arg0: i32) -> (i32, i32) {
    %c0_i32 = arith.constant 0 : i32
    %c0_i32_0 = arith.constant 0 : i32
    return %c0_i32, %arg0 : i32, i32
  }
  func.func @transform_3(%arg0: i32) -> (i32, i32) {
    %c0_i32 = arith.constant 0 : i32
    %c0_i32_0 = arith.constant 0 : i32
    return %c0_i32, %arg0 : i32, i32
  }
  func.func @transform_4(%arg0: i32) -> (i32, i32) {
    %c0_i32 = arith.constant 0 : i32
    %c0_i32_0 = arith.constant 0 : i32
    return %c0_i32, %arg0 : i32, i32
  }
  func.func @transform_5(%arg0: i32) -> (i32, i32) {
    %c0_i32 = arith.constant 0 : i32
    %c0_i32_0 = arith.constant 0 : i32
    return %c0_i32, %arg0 : i32, i32
  }
}

</mosaic_0001>

<llo_original>
// kernel: tpu_custom_call.1
$region0: #{tpu_custom_call.1}
  #allocation0 [shape = 'u32[]', space=smem, size = 0x4, offset = 0x4, fixed_abs, tag = 'smem constant byte address 0x4 - core index']
  #allocation1 [shape = 'u32[72,128]{1,0:T(1,128)}', space=vmem, size = 0x9000, scoped, tag = 'internal scratch']
  %s0 = inlined_call_operand.vmem [shape: f32[22,16], index: 0, kind: input, shape index: {}]
  %s1 = inlined_call_operand.vmem [shape: f32[3,16], index: 1, kind: input, shape index: {}]
  %s2 = inlined_call_operand.vmem [shape: f32[5,16], index: 2, kind: input, shape index: {}]
  %s3 = inlined_call_operand.vmem [shape: f32[7,16], index: 3, kind: input, shape index: {}]
  %s4 = inlined_call_operand.vmem [shape: f32[3,16], index: 4, kind: input, shape index: {}]
  %s5 = inlined_call_operand.hbm [shape: f32[16,16], index: 5, kind: output, shape index: {}]
  %s6 = sld [smem:[#allocation0]]
  $region30: #{tpu_custom_call.1} parent=0
    _
  %s8 = ssub.s32 1, %s6
  %s9 = scalar_select 0, %s8, %s6
  $region1: #{tpu_custom_call.1} parent=0
    #allocation2 [shape = 'u8[8192]{0}', space=vmem, size = 0x2000, scoped, tag = 'output window, operand 0, single buffered']
    #allocation3 [shape = 's32[1]{0}', space=sflag, size = 0x4, scoped, tag = 'scoped memory for tpu_custom_call.1']
    %10 = vsyncpa [#allocation3], 0
    // Predicated region
    $region2: #{tpu_custom_call.1} parent=1 // pred_check
      _
    $region3: #{tpu_custom_call.1} parent=1 // pred_check_branch
      %12 = sbr.rel (0) target = $region5
    $region4: #{tpu_custom_call.1} parent=1 // pred_region
      _
    $region5: #{tpu_custom_call.1} parent=1 // pred_fallthru
      _
    // Predicated region
    $region6: #{tpu_custom_call.1} parent=1 // pred_check
      _
    $region7: #{tpu_custom_call.1} parent=1 // pred_check_branch
      %14 = sbr.rel (0) target = $region9
    $region8: #{tpu_custom_call.1} parent=1 // pred_region
      _
    $region9: #{tpu_custom_call.1} parent=1 // pred_fallthru
      _
    // Predicated region
    $region10: #{tpu_custom_call.1} parent=1 // pred_check
      _
    $region11: #{tpu_custom_call.1} parent=1 // pred_check_branch
      %16 = sbr.rel (0) target = $region13
    $region12: #{tpu_custom_call.1} parent=1 // pred_region
      _
    $region13: #{tpu_custom_call.1} parent=1 // pred_fallthru
      _
    // Predicated region
    $region14: #{tpu_custom_call.1} parent=1 // pred_check
      _
    $region15: #{tpu_custom_call.1} parent=1 // pred_check_branch
      %18 = sbr.rel (0) target = $region17
    $region16: #{tpu_custom_call.1} parent=1 // pred_region
      _
    $region17: #{tpu_custom_call.1} parent=1 // pred_fallthru
      _
    // Predicated region
    $region18: #{tpu_custom_call.1} parent=1 // pred_check
      _
    $region19: #{tpu_custom_call.1} parent=1 // pred_check_branch
      %20 = sbr.rel (0) target = $region21
    $region20: #{tpu_custom_call.1} parent=1 // pred_region
      _
    $region21: #{tpu_custom_call.1} parent=1 // pred_fallthru
      _
    %v21 = vld [vmem:[%s0] sm:$0xff]
    %v22 = vld [vmem:[%s0 + $0x8] sm:$0xff]
    %v23 = vld [vmem:[%s0 + $0x10] sm:$0x3f]
    %v24 = vld [vmem:[%s1] sm:$0x1]
    %v25 = vperm.slane %v24, 0
    %v26 = vmul.f32 %v25, %v21
    %v27 = vmul.f32 %v25, %v22
    %v28 = vmul.f32 %v25, %v23
    %v29 = vadd.f32 %v26, 0.0
    %v30 = vadd.f32 %v27, 0.0
    %v31 = vadd.f32 %v28, 0.0
    %v32 = vld [vmem:[%s1 + $0x1] sm:$0x1]
    %v33 = vperm.slane %v32, 0
    %v34 = vmul.f32 %v33, %v21
    %v35 = vmul.f32 %v33, %v22
    %v36 = vmul.f32 %v33, %v23
    %vm40 = vcmask 1046528
    %v41 = vrot.slane %v34, 1
    %v42 = vrot.slane %v35, 1
    %v43 = vsel %vm40, %v41, %v42
    %v44 = vrot.slane %v36, 1
    %v45 = vsel %vm40, %v42, %v44
    %v49 = vadd.f32 %v29, %v43
    %v50 = vadd.f32 %v30, %v45
    %v51 = vadd.f32 %v31, %v44
    %v52 = vld [vmem:[%s1 + $0x2] sm:$0x1]
    %v53 = vperm.slane %v52, 0
    %v54 = vmul.f32 %v53, %v21
    %v55 = vmul.f32 %v53, %v22
    %v56 = vmul.f32 %v53, %v23
    %vm60 = vcmask 1045504
    %v61 = vrot.slane %v54, 2
    %v62 = vrot.slane %v55, 2
    %v63 = vsel %vm60, %v61, %v62
    %v64 = vrot.slane %v56, 2
    %v65 = vsel %vm60, %v62, %v64
    %v69 = vadd.f32 %v49, %v63
    %v70 = vadd.f32 %v50, %v65
    %v71 = vadd.f32 %v51, %v64
    %v72 = vld [vmem:[%s4] sm:$0x1]
    %v73 = vperm.slane %v72, 0
    %v74 = vmul.f32 %v69, %v73
    %v75 = vmul.f32 %v70, %v73
    %v76 = vmul.f32 %v71, %v73
    %v77 = vmax.f32 %v74, 0.0
    %v78 = vmax.f32 %v75, 0.0
    %v79 = vmax.f32 %v76, 0.0
    %v80 = vadd.f32 %v77, 0.0
    %v81 = vadd.f32 %v78, 0.0
    %v82 = vadd.f32 %v79, 0.0
    %v83 = vld [vmem:[%s2] sm:$0x1]
    %v84 = vperm.slane %v83, 0
    %v85 = vmul.f32 %v84, %v21
    %v86 = vmul.f32 %v84, %v22
    %v87 = vmul.f32 %v84, %v23
    %v88 = vadd.f32 %v85, 0.0
    %v89 = vadd.f32 %v86, 0.0
    %v90 = vadd.f32 %v87, 0.0
    %v91 = vld [vmem:[%s2 + $0x1] sm:$0x1]
    %v92 = vperm.slane %v91, 0
    %v93 = vmul.f32 %v92, %v21
    %v94 = vmul.f32 %v92, %v22
    %v95 = vmul.f32 %v92, %v23
    %v99 = vrot.slane %v93, 1
    %v100 = vrot.slane %v94, 1
    %v101 = vsel %vm40, %v99, %v100
    %v102 = vrot.slane %v95, 1
    %v103 = vsel %vm40, %v100, %v102
    %v107 = vadd.f32 %v88, %v101
    %v108 = vadd.f32 %v89, %v103
    %v109 = vadd.f32 %v90, %v102
    %v110 = vld [vmem:[%s2 + $0x2] sm:$0x1]
    %v111 = vperm.slane %v110, 0
    %v112 = vmul.f32 %v111, %v21
    %v113 = vmul.f32 %v111, %v22
    %v114 = vmul.f32 %v111, %v23
    %v118 = vrot.slane %v112, 2
    %v119 = vrot.slane %v113, 2
    %v120 = vsel %vm60, %v118, %v119
    %v121 = vrot.slane %v114, 2
    %v122 = vsel %vm60, %v119, %v121
    %v126 = vadd.f32 %v107, %v120
    %v127 = vadd.f32 %v108, %v122
    %v128 = vadd.f32 %v109, %v121
    %v129 = vld [vmem:[%s2 + $0x3] sm:$0x1]
    %v130 = vperm.slane %v129, 0
    %v131 = vmul.f32 %v130, %v21
    %v132 = vmul.f32 %v130, %v22
    %v133 = vmul.f32 %v130, %v23
    %vm137 = vcmask 1044480
    %v138 = vrot.slane %v131, 3
    %v139 = vrot.slane %v132, 3
    %v140 = vsel %vm137, %v138, %v139
    %v141 = vrot.slane %v133, 3
    %v142 = vsel %vm137, %v139, %v141
    %v146 = vadd.f32 %v126, %v140
    %v147 = vadd.f32 %v127, %v142
    %v148 = vadd.f32 %v128, %v141
    %v149 = vld [vmem:[%s2 + $0x4] sm:$0x1]
    %v150 = vperm.slane %v149, 0
    %v151 = vmul.f32 %v150, %v21
    %v152 = vmul.f32 %v150, %v22
    %v153 = vmul.f32 %v150, %v23
    %vm157 = vcmask 1043456
    %v158 = vrot.slane %v151, 4
    %v159 = vrot.slane %v152, 4
    %v160 = vsel %vm157, %v158, %v159
    %v161 = vrot.slane %v153, 4
    %v162 = vsel %vm157, %v159, %v161
    %v166 = vadd.f32 %v146, %v160
    %v167 = vadd.f32 %v147, %v162
    %v168 = vadd.f32 %v148, %v161
    %v169 = vld [vmem:[%s4 + $0x1] sm:$0x1]
    %v170 = vperm.slane %v169, 0
    %v171 = vmul.f32 %v166, %v170
    %v172 = vmul.f32 %v167, %v170
    %v173 = vmul.f32 %v168, %v170
    %v174 = vmax.f32 %v171, 0.0
    %v175 = vmax.f32 %v172, 0.0
    %v176 = vmax.f32 %v173, 0.0
    %vm180 = vcmask 1040384
    %v181 = vrot.slane %v174, 7
    %v182 = vrot.slane %v175, 7
    %v183 = vsel %vm180, %v181, %v182
    %v184 = vrot.slane %v176, 7
    %v185 = vsel %vm180, %v182, %v184
    %v189 = vadd.f32 %v80, %v181
    %v190 = vadd.f32 %v81, %v183
    %v191 = vadd.f32 %v82, %v185
    %v192 = vld [vmem:[%s3] sm:$0x1]
    %v193 = vperm.slane %v192, 0
    %v194 = vmul.f32 %v193, %v21
    %v195 = vmul.f32 %v193, %v22
    %v196 = vadd.f32 %v194, 0.0
    %v197 = vadd.f32 %v195, 0.0
    %v198 = vld [vmem:[%s3 + $0x1] sm:$0x1]
    %v199 = vperm.slane %v198, 0
    %v200 = vmul.f32 %v199, %v21
    %v201 = vmul.f32 %v199, %v22
    %v202 = vmul.f32 %v199, %v23
    %v206 = vrot.slane %v200, 1
    %v207 = vrot.slane %v201, 1
    %v208 = vsel %vm40, %v206, %v207
    %v209 = vrot.slane %v202, 1
    %v210 = vsel %vm40, %v207, %v209
    %v213 = vadd.f32 %v196, %v208
    %v214 = vadd.f32 %v197, %v210
    %v215 = vld [vmem:[%s3 + $0x2] sm:$0x1]
    %v216 = vperm.slane %v215, 0
    %v217 = vmul.f32 %v216, %v21
    %v218 = vmul.f32 %v216, %v22
    %v219 = vmul.f32 %v216, %v23
    %v223 = vrot.slane %v217, 2
    %v224 = vrot.slane %v218, 2
    %v225 = vsel %vm60, %v223, %v224
    %v226 = vrot.slane %v219, 2
    %v227 = vsel %vm60, %v224, %v226
    %v230 = vadd.f32 %v213, %v225
    %v231 = vadd.f32 %v214, %v227
    %v232 = vld [vmem:[%s3 + $0x3] sm:$0x1]
    %v233 = vperm.slane %v232, 0
    %v234 = vmul.f32 %v233, %v21
    %v235 = vmul.f32 %v233, %v22
    %v236 = vmul.f32 %v233, %v23
    %v240 = vrot.slane %v234, 3
    %v241 = vrot.slane %v235, 3
    %v242 = vsel %vm137, %v240, %v241
    %v243 = vrot.slane %v236, 3
    %v244 = vsel %vm137, %v241, %v243
    %v247 = vadd.f32 %v230, %v242
    %v248 = vadd.f32 %v231, %v244
    %v249 = vld [vmem:[%s3 + $0x4] sm:$0x1]
    %v250 = vperm.slane %v249, 0
    %v251 = vmul.f32 %v250, %v21
    %v252 = vmul.f32 %v250, %v22
    %v253 = vmul.f32 %v250, %v23
    %v257 = vrot.slane %v251, 4
    %v258 = vrot.slane %v252, 4
    %v259 = vsel %vm157, %v257, %v258
    %v260 = vrot.slane %v253, 4
    %v261 = vsel %vm157, %v258, %v260
    %v264 = vadd.f32 %v247, %v259
    %v265 = vadd.f32 %v248, %v261
    %v266 = vld [vmem:[%s3 + $0x5] sm:$0x1]
    %v267 = vperm.slane %v266, 0
    %v268 = vmul.f32 %v267, %v21
    %v269 = vmul.f32 %v267, %v22
    %v270 = vmul.f32 %v267, %v23
    %vm274 = vcmask 1042432
    %v275 = vrot.slane %v268, 5
    %v276 = vrot.slane %v269, 5
    %v277 = vsel %vm274, %v275, %v276
    %v278 = vrot.slane %v270, 5
    %v279 = vsel %vm274, %v276, %v278
    %v282 = vadd.f32 %v264, %v277
    %v283 = vadd.f32 %v265, %v279
    %v284 = vld [vmem:[%s3 + $0x6] sm:$0x1]
    %v285 = vperm.slane %v284, 0
    %v286 = vmul.f32 %v285, %v21
    %v287 = vmul.f32 %v285, %v22
    %v288 = vmul.f32 %v285, %v23
    %vm292 = vcmask 1041408
    %v293 = vrot.slane %v286, 6
    %v294 = vrot.slane %v287, 6
    %v295 = vsel %vm292, %v293, %v294
    %v296 = vrot.slane %v288, 6
    %v297 = vsel %vm292, %v294, %v296
    %v300 = vadd.f32 %v282, %v295
    %v301 = vadd.f32 %v283, %v297
    %v302 = vld [vmem:[%s4 + $0x2] sm:$0x1]
    %v303 = vperm.slane %v302, 0
    %v304 = vmul.f32 %v300, %v303
    %v305 = vmul.f32 %v301, %v303
    %v306 = vmax.f32 %v304, 0.0
    %v307 = vmax.f32 %v305, 0.0
    %v310 = vrot.slane %v306, 6
    %v311 = vrot.slane %v307, 6
    %v312 = vsel %vm292, %v310, %v311
    %v316 = vadd.f32 %v189, %v310
    %v317 = vadd.f32 %v190, %v312
    %v318 = vadd.f32 %v191, %v311
    %v319 = vmul.f32 %v316, 0.33333334
    %v320 = vmul.f32 %v317, 0.33333334
    %v321 = vmul.f32 %v318, 0.33333334
    %v325 = vrot.slane %v319, 7
    %v326 = vrot.slane %v320, 7
    %v327 = vsel %vm180, %v325, %v326
    %v328 = vrot.slane %v321, 7
    %v329 = vsel %vm180, %v326, %v328
    %v333 = vadd.f32 %v21, %v325
    %v334 = vadd.f32 %v22, %v327
    %v335 = vadd.f32 %v23, %v329
    %vm336 = vcmask 130051
    %337 = vst.msk [vmem:[#allocation2 - $0x3] sm:$0xf8] %vm336, %v333
    %vm338 = vcmask 130048
    %339 = vst.msk [vmem:[#allocation2 + $0x5] sm:$0xff] %vm338, %v334
    %vm340 = vcmask 124928
    %341 = vst.msk [vmem:[#allocation2 + $0xd] sm:$0x7] %vm340, %v335
    // Predicated region
    $region22: #{tpu_custom_call.1} parent=1 // pred_check
      _
    $region23: #{tpu_custom_call.1} parent=1 // pred_check_branch
      %343 = sbr.rel (0) target = $region25
    $region24: #{tpu_custom_call.1} parent=1 // pred_region
      %345 = vsyncadd [#allocation3], 0
      %s346 = sshll.u32 [#allocation2], 4
      %s347 = int_to_ptr.vmem [resolvable:$true] %s346
      %s348 = sshll.u32 %s5, 4
      %s349 = int_to_ptr.hbm [resolvable:$true] %s348
      %354 = dma.vmem_to_hbm [thread:$0]  %s347, 256, %s349, [#allocation3], 128, 128, 8
    $region25: #{tpu_custom_call.1} parent=1 // pred_fallthru
      _
    // Predicated region
    $region26: #{tpu_custom_call.1} parent=1 // pred_check
      _
    $region27: #{tpu_custom_call.1} parent=1 // pred_check_branch
      %356 = sbr.rel (0) target = $region29
    $region28: #{tpu_custom_call.1} parent=1 // pred_region
      %358 = dma.done [#allocation3], 256
    $region29: #{tpu_custom_call.1} parent=1 // pred_fallthru
      _
    %359 = vsyncpa [#allocation3], 1

</llo_original>
